<compile_context>
chip_gen: v6e
topology: v6e:2x2x1
jax: 0.10.0
libtpu: 0.0.40
codegen_flags: <defaults>
</compile_context>

<pallas_src>
import functools

import jax
import jax.numpy as jnp
from jax import lax
from jax.experimental import pallas as pl
from jax.experimental.pallas import tpu as pltpu


def _rpe_kernel(xyz_ref, table_ref, out_ref, *, pos_bnd, rpe_num):
    # xyz_ref:   (1, 3, TILE_T)   int32   (tokens on lanes)
    # table_ref: (3, H, rpe_num)  float32 (per-axis table, heads on sublanes, resident)
    # out_ref:   (1, H, TILE_T)   float32 (lane-dense output)
    tile_t = xyz_ref.shape[2]

    # Per-axis index in [0, rpe_num): clamp + shift.  One add covers all 3 axes.
    idx = jnp.clip(xyz_ref[0], -pos_bnd, pos_bnd) + pos_bnd        # (3, TILE_T) int32

    # Sublane iota over table rows, built once per tile and reused for all 3 axes.
    row = lax.broadcasted_iota(jnp.int32, (rpe_num, tile_t), 0)    # (rpe_num, TILE_T)

    acc = None
    for c in range(3):
        onehot = (row == idx[c:c + 1, :]).astype(jnp.float32)      # (rpe_num, TILE_T)
        part = jnp.dot(table_ref[c], onehot,
                       preferred_element_type=jnp.float32)         # (H, TILE_T) on MXU
        acc = part if acc is None else acc + part
    out_ref[0] = acc


def rpe_forward(xyz, rpe_table, *, patch_size, num_heads, dilation=1, max_tile_t=4096):
    """xyz: (B, N, K, 3) int, rpe_table: (3*rpe_num, num_heads) f32.

    Returns (B, num_heads, N, K) float32, matching the PyTorch RPE.forward.
    """
    pos_bnd = int(0.8 * patch_size * dilation ** 0.5)
    rpe_num = 2 * pos_bnd + 1
    assert rpe_table.shape == (3 * rpe_num, num_heads)

    B, N, K, _ = xyz.shape
    T = N * K

    # Token tile: whole T if it fits (block == full dim is always layout-legal),
    # else a 128-multiple tile; the ragged last tile uses Pallas partial blocks.
    TILE_T = T if T <= max_tile_t else max_tile_t   # max_tile_t is a multiple of 128
    num_t = pl.cdiv(T, TILE_T)

    # Layout plumbing (wrapper-side, cheap): tokens last (lane-dense); table pre-split
    # per axis with heads on sublanes / rpe index on lanes.
    xyz_t = jnp.transpose(xyz.reshape(B, T, 3).astype(jnp.int32), (0, 2, 1))  # (B, 3, T)
    table_t = jnp.transpose(
        rpe_table.astype(jnp.float32).reshape(3, rpe_num, num_heads),
        (0, 2, 1))                                                            # (3, H, rpe_num)

    kernel = functools.partial(_rpe_kernel, pos_bnd=pos_bnd, rpe_num=rpe_num)

    out_t = pl.pallas_call(
        kernel,
        out_shape=jax.ShapeDtypeStruct((B, num_heads, T), jnp.float32),
        grid=(B, num_t),
        in_specs=[
            pl.BlockSpec((1, 3, TILE_T), lambda b, t: (b, 0, t)),
            pl.BlockSpec((3, num_heads, rpe_num), lambda b, t: (0, 0, 0)),  # resident
        ],
        out_specs=pl.BlockSpec((1, num_heads, TILE_T), lambda b, t: (b, 0, t)),
        compiler_params=pltpu.CompilerParams(
            dimension_semantics=("parallel", "parallel")),
    )(xyz_t, table_t)

    # T == N*K is the trailing (contiguous) axis -> free reshape, no transpose, no slice.
    return out_t.reshape(B, num_heads, N, K)


def rpe_reference(xyz, rpe_table, *, patch_size, num_heads, dilation=1):
    """Pure-JAX reference mirroring the PyTorch code (gather + sum + permute)."""
    pos_bnd = int(0.8 * patch_size * dilation ** 0.5)
    rpe_num = 2 * pos_bnd + 1
    mul = jnp.arange(3, dtype=jnp.int32) * rpe_num
    idx = jnp.clip(xyz, -pos_bnd, pos_bnd) + (pos_bnd + mul)       # (B,N,K,3)
    out = rpe_table[idx.reshape(-1)]                               # (B*N*K*3, H)
    out = out.reshape(idx.shape + (num_heads,)).sum(axis=3)        # (B,N,K,H)
    return jnp.transpose(out, (0, 3, 1, 2))                        # (B,H,N,K)


if __name__ == "__main__":
    # Small, module-consistent shapes.
    patch_size = 8
    num_heads = 4
    dilation = 1
    B, N, K = 2, 8, 8

    pos_bnd = int(0.8 * patch_size * dilation ** 0.5)
    rpe_num = 2 * pos_bnd + 1

    key = jax.random.PRNGKey(0)
    k_xyz, k_tab = jax.random.split(key)

    # Integer relative coordinates (PyTorch index_select requires integer idx).
    xyz = jax.random.randint(k_xyz, (B, N, K, 3), -patch_size, patch_size + 1,
                             dtype=jnp.int32)

    # trunc_normal_(std=0.02) equivalent, deterministic.
    rpe_table = 0.02 * jax.random.truncated_normal(
        k_tab, -2.0, 2.0, (3 * rpe_num, num_heads), dtype=jnp.float32)

    out = rpe_forward(xyz, rpe_table, patch_size=patch_size,
                      num_heads=num_heads, dilation=dilation)
    out = jax.block_until_ready(out)

    ref = rpe_reference(xyz, rpe_table, patch_size=patch_size,
                        num_heads=num_heads, dilation=dilation)
    assert out.shape == (B, num_heads, N, K)
    assert jnp.allclose(out, ref, atol=1e-5, rtol=1e-5)

    print("KERNEL_OK")
</pallas_src>

<mosaic_0001>
module attributes {stable_mosaic.version = 11 : i64} {
  func.func @_rpe_kernel(%arg0: i32, %arg1: i32, %arg2: memref<1x3x64xi32, #tpu.memory_space<vmem>>, %arg3: memref<3x4x13xf32, #tpu.memory_space<vmem>>, %arg4: memref<1x4x64xf32, #tpu.memory_space<vmem>>) attributes {dimension_semantics = [#tpu.dimension_semantics<parallel>, #tpu.dimension_semantics<parallel>], iteration_bounds = array<i64: 2, 1>, scalar_prefetch = 0 : i64, scratch_operands = 0 : i64, tpu.core_type = #tpu.core_type<tc>, window_params = [{transform_indices = @transform_0, window_bounds = array<i64: 1, 3, 64>}, {pipeline_mode = #tpu.pipeline_mode<synchronous>, transform_indices = @transform_1, window_bounds = array<i64: 3, 4, 13>}, {transform_indices = @transform_2, window_bounds = array<i64: 1, 4, 64>}]} {
    %c0 = arith.constant 0 : index
    %c0_0 = arith.constant 0 : index
    %c0_1 = arith.constant 0 : index
    %0 = vector.load %arg2[%c0, %c0_0, %c0_1] : memref<1x3x64xi32, #tpu.memory_space<vmem>>, vector<1x3x64xi32>
    %1 = vector.shape_cast %0 : vector<1x3x64xi32> to vector<3x64xi32>
    %c-6_i32 = arith.constant -6 : i32
    %c6_i32 = arith.constant 6 : i32
    %2 = vector.broadcast %c-6_i32 : i32 to vector<3x64xi32>
    %3 = arith.maxsi %2, %1 : vector<3x64xi32>
    %4 = vector.broadcast %c6_i32 : i32 to vector<3x64xi32>
    %5 = arith.minsi %4, %3 : vector<3x64xi32>
    %c6_i32_2 = arith.constant 6 : i32
    %6 = vector.broadcast %c6_i32_2 : i32 to vector<3x64xi32>
    %7 = arith.addi %5, %6 : vector<3x64xi32>
    %8 = tpu.iota {dimensions = array<i32: 0>} : vector<13x64xi32>
    %9 = vector.extract_strided_slice %7 {offsets = [0, 0], sizes = [1, 64], strides = [1, 1]} : vector<3x64xi32> to vector<1x64xi32>
    %10 = vector.broadcast %9 : vector<1x64xi32> to vector<13x64xi32>
    %11 = arith.cmpi eq, %8, %10 : vector<13x64xi32>
    %12 = arith.extui %11 : vector<13x64xi1> to vector<13x64xi32>
    %13 = arith.sitofp %12 : vector<13x64xi32> to vector<13x64xf32>
    %c0_3 = arith.constant 0 : index
    %c0_4 = arith.constant 0 : index
    %c0_5 = arith.constant 0 : index
    %14 = vector.load %arg3[%c0_3, %c0_4, %c0_5] : memref<3x4x13xf32, #tpu.memory_space<vmem>>, vector<1x4x13xf32>
    %15 = vector.shape_cast %14 : vector<1x4x13xf32> to vector<4x13xf32>
    %cst = arith.constant dense<0.000000e+00> : vector<4x64xf32>
    %16 = tpu.matmul %15, %13, %cst {dimension_numbers = #tpu.dot_dimension_numbers<[1], [0], [0], [1], [0, 0, 1, 1], [], []>} : vector<4x13xf32>, vector<13x64xf32>, vector<4x64xf32> -> vector<4x64xf32>
    %17 = vector.extract_strided_slice %7 {offsets = [1, 0], sizes = [1, 64], strides = [1, 1]} : vector<3x64xi32> to vector<1x64xi32>
    %18 = vector.broadcast %17 : vector<1x64xi32> to vector<13x64xi32>
    %19 = arith.cmpi eq, %8, %18 : vector<13x64xi32>
    %20 = arith.extui %19 : vector<13x64xi1> to vector<13x64xi32>
    %21 = arith.sitofp %20 : vector<13x64xi32> to vector<13x64xf32>
    %c1 = arith.constant 1 : index
    %c0_6 = arith.constant 0 : index
    %c0_7 = arith.constant 0 : index
    %22 = vector.load %arg3[%c1, %c0_6, %c0_7] : memref<3x4x13xf32, #tpu.memory_space<vmem>>, vector<1x4x13xf32>
    %23 = vector.shape_cast %22 : vector<1x4x13xf32> to vector<4x13xf32>
    %cst_8 = arith.constant dense<0.000000e+00> : vector<4x64xf32>
    %24 = tpu.matmul %23, %21, %cst_8 {dimension_numbers = #tpu.dot_dimension_numbers<[1], [0], [0], [1], [0, 0, 1, 1], [], []>} : vector<4x13xf32>, vector<13x64xf32>, vector<4x64xf32> -> vector<4x64xf32>
    %25 = arith.addf %16, %24 : vector<4x64xf32>
    %26 = vector.extract_strided_slice %7 {offsets = [2, 0], sizes = [1, 64], strides = [1, 1]} : vector<3x64xi32> to vector<1x64xi32>
    %27 = vector.broadcast %26 : vector<1x64xi32> to vector<13x64xi32>
    %28 = arith.cmpi eq, %8, %27 : vector<13x64xi32>
    %29 = arith.extui %28 : vector<13x64xi1> to vector<13x64xi32>
    %30 = arith.sitofp %29 : vector<13x64xi32> to vector<13x64xf32>
    %c2 = arith.constant 2 : index
    %c0_9 = arith.constant 0 : index
    %c0_10 = arith.constant 0 : index
    %31 = vector.load %arg3[%c2, %c0_9, %c0_10] : memref<3x4x13xf32, #tpu.memory_space<vmem>>, vector<1x4x13xf32>
    %32 = vector.shape_cast %31 : vector<1x4x13xf32> to vector<4x13xf32>
    %cst_11 = arith.constant dense<0.000000e+00> : vector<4x64xf32>
    %33 = tpu.matmul %32, %30, %cst_11 {dimension_numbers = #tpu.dot_dimension_numbers<[1], [0], [0], [1], [0, 0, 1, 1], [], []>} : vector<4x13xf32>, vector<13x64xf32>, vector<4x64xf32> -> vector<4x64xf32>
    %34 = arith.addf %25, %33 : vector<4x64xf32>
    %c0_12 = arith.constant 0 : index
    %c0_13 = arith.constant 0 : index
    %c0_14 = arith.constant 0 : index
    %35 = vector.load %arg4[%c0_12, %c0_13, %c0_14] : memref<1x4x64xf32, #tpu.memory_space<vmem>>, vector<1x4x64xf32>
    %36 = vector.shape_cast %35 : vector<1x4x64xf32> to vector<4x64xf32>
    %37 = vector.shape_cast %34 : vector<4x64xf32> to vector<1x4x64xf32>
    tpu.vector_store %arg4[%c0_12, %c0_13, %c0_14], %37 {strides = array<i32>} : memref<1x4x64xf32, #tpu.memory_space<vmem>>, vector<1x4x64xf32>,
    return
  }
  func.func @transform_0(%arg0: i32, %arg1: i32) -> (i32, i32, i32) {
    %c0_i32 = arith.constant 0 : i32
    %c0_i32_0 = arith.constant 0 : i32
    return %arg0, %c0_i32, %arg1 : i32, i32, i32
  }
  func.func @transform_1(%arg0: i32, %arg1: i32) -> (i32, i32, i32) {
    %c0_i32 = arith.constant 0 : i32
    %c0_i32_0 = arith.constant 0 : i32
    %c0_i32_1 = arith.constant 0 : i32
    %c0_i32_2 = arith.constant 0 : i32
    return %c0_i32, %c0_i32_0, %c0_i32_1 : i32, i32, i32
  }
  func.func @transform_2(%arg0: i32, %arg1: i32) -> (i32, i32, i32) {
    %c0_i32 = arith.constant 0 : i32
    %c0_i32_0 = arith.constant 0 : i32
    return %arg0, %c0_i32, %arg1 : i32, i32, i32
  }
}

</mosaic_0001>

<llo_original>
// kernel: tpu_custom_call.1
$region0: #{tpu_custom_call.1}
  #allocation0 [shape = 'u32[]', space=smem, size = 0x4, offset = 0x4, fixed_abs, tag = 'smem constant byte address 0x4 - core index']
  #allocation1 [shape = 'u32[144,128]{1,0:T(1,128)}', space=vmem, size = 0x12000, scoped, tag = 'internal scratch']
  %s0 = inlined_call_operand.vmem [shape: s32[2,3,64], index: 0, kind: input, shape index: {}]
  %s1 = inlined_call_operand.vmem [shape: f32[3,4,13], index: 1, kind: input, shape index: {}]
  %s2 = inlined_call_operand.hbm [shape: f32[2,4,64], index: 2, kind: output, shape index: {}]
  %s3 = sld [smem:[#allocation0]]
  $region41: #{tpu_custom_call.1} parent=0
    _
  %s5 = ssub.s32 1, %s3
  %s6 = scalar_select 0, %s5, %s3
  $region1: #{tpu_custom_call.1} parent=0
    #allocation2 [shape = 'u8[4096]{0}', space=vmem, size = 0x1000, scoped, tag = 'output window, operand 0']
    #allocation3 [shape = 's32[2]{0}', space=sflag, size = 0x8, scoped, tag = 'scoped memory for tpu_custom_call.1']
    %7 = vsyncpa [#allocation3], 0
    %s8 = scalar_lea.sflag [#allocation3], 1
    %9 = vsyncpa %s8, 0
    loop: start=0, step=1, limit=4
    $region2: #{tpu_custom_call.1} parent=1 // loop_pre_header
      _
    $region3: #{tpu_custom_call.1} parent=1 // loop_header
      %s11 = sphi 0, %s15
      %p12 = scmp.ge.s32.totalorder %s11, 4
      %s18 = sphi 0, %s30
      %s19 = sphi 0, %s26
      %s20 = sphi 0, %s18
      %s21 = sphi 0, %s19
      %s22 = sphi 0, %s20
      %s23 = sphi 0, %s21
      %s35 = sphi 0, %s37
      %s38 = sphi 0, %s35
      %s39 = sphi 0, %s38
      %s55 = sphi 0, %s39
      %s59 = sphi 0, %s59
      %s61 = sphi 0, %s59
      %s62 = sphi 0, %s61
      %s76 = sphi 0, %s62
      %s84 = sphi 0, %s86
      %s87 = sphi 0, %s84
      %s88 = sphi 0, %s87
      %s104 = sphi 0, %s88
    $region4: #{tpu_custom_call.1} parent=1 // loop_header_branch
      %14 = sbr.rel (%p12) target = $region8
    $region5: #{tpu_custom_call.1} parent=1 // loop_body
      %s16 = ssub.s32 %s11, 1
      %s17 = ssub.s32 %s11, 2
      %s24 = sadd.s32 1, %s19
      %p25 = scmp.ge.s32.totalorder %s24, 1
      %s26 = scalar_select %p25, 0, %s24
      %s27 = sadd.s32 1, %s18
      %s28 = scalar_select %p25, %s27, %s18
      %p29 = scmp.ge.s32.totalorder %s28, 2
      %s30 = scalar_select %p29, 0, %s28
      %s31 = ssub.s32 %s18, %s30
      %s32 = ssub.s32 %s19, %s26
      %s33 = sor.u32 %s31, %s32
      %p34 = scmp.eq.s32.totalorder %s33, 0
      %s36 = sadd.s32 %s35, 1
      %s37 = scalar_select %p34, %s35, %s36
      %p40 = pneg %p34
      %p41 = scmp.eq.s32.totalorder %s11, 1
      %p42 = por %p40, %p41
      %p43 = scmp.ne.s32.totalorder %s35, %s38
      %p44 = scmp.eq.s32.totalorder %s11, 0
      %p45 = por %p43, %p44
      %p46 = scmp.ne.s32.totalorder %s35, %s38
      %p47 = scmp.eq.s32.totalorder %s16, 1
      %p48 = por %p46, %p47
      %p49 = scmp.ne.s32.totalorder %s38, %s39
      %p50 = scmp.eq.s32.totalorder %s16, 0
      %p51 = por %p49, %p50
      %p52 = scmp.ne.s32.totalorder %s38, %s39
      %p53 = scmp.eq.s32.totalorder %s17, 1
      %p54 = por %p52, %p53
      %p56 = scmp.ne.s32.totalorder %s39, %s55
      %p57 = scmp.eq.s32.totalorder %s17, 0
      %p58 = por %p56, %p57
      %s60 = sadd.s32 %s59, 1
      %p63 = scmp.eq.s32.totalorder %s11, 1
      %p64 = scmp.ne.s32.totalorder %s59, %s61
      %p65 = scmp.eq.s32.totalorder %s11, 0
      %p66 = por %p64, %p65
      %p67 = scmp.ne.s32.totalorder %s59, %s61
      %p68 = scmp.eq.s32.totalorder %s16, 1
      %p69 = por %p67, %p68
      %p70 = scmp.ne.s32.totalorder %s61, %s62
      %p71 = scmp.eq.s32.totalorder %s16, 0
      %p72 = por %p70, %p71
      %p73 = scmp.ne.s32.totalorder %s61, %s62
      %p74 = scmp.eq.s32.totalorder %s17, 1
      %p75 = por %p73, %p74
      %p77 = scmp.ne.s32.totalorder %s62, %s76
      %p78 = scmp.eq.s32.totalorder %s17, 0
      %p79 = por %p77, %p78
      %s80 = ssub.s32 %s18, %s30
      %s81 = ssub.s32 %s19, %s26
      %s82 = sor.u32 %s80, %s81
      %p83 = scmp.eq.s32.totalorder %s82, 0
      %s85 = sadd.s32 %s84, 1
      %s86 = scalar_select %p83, %s84, %s85
      %p89 = pneg %p83
      %p90 = scmp.eq.s32.totalorder %s11, 1
      %p91 = por %p89, %p90
      %p92 = scmp.ne.s32.totalorder %s84, %s87
      %p93 = scmp.eq.s32.totalorder %s11, 0
      %p94 = por %p92, %p93
      %p95 = scmp.ne.s32.totalorder %s84, %s87
      %p96 = scmp.eq.s32.totalorder %s16, 1
      %p97 = por %p95, %p96
      %p98 = scmp.ne.s32.totalorder %s87, %s88
      %p99 = scmp.eq.s32.totalorder %s16, 0
      %p100 = por %p98, %p99
      %p101 = scmp.ne.s32.totalorder %s87, %s88
      %p102 = scmp.eq.s32.totalorder %s17, 1
      %p103 = por %p101, %p102
      %p105 = scmp.ne.s32.totalorder %s88, %s104
      %p106 = scmp.eq.s32.totalorder %s17, 0
      %p107 = por %p105, %p106
      %p108 = scmp.le.s32.totalorder 1, %s11
      %p109 = scmp.lt.s32.totalorder %s11, 3
      %p110 = pnand %p108, %p109
      %p111 = pneg %p110
      // Predicated region
      $region9: #{tpu_custom_call.1} parent=5 // pred_check
        _
      $region10: #{tpu_custom_call.1} parent=5 // pred_check_branch
        %113 = sbr.rel (%p110) target = $region12
      $region11: #{tpu_custom_call.1} parent=5 // pred_region
        %s114 = ssub.s32 %s11, 1
        // Predicated region
        $region13: #{tpu_custom_call.1} parent=11 // pred_check
          %p115 = pneg %p72
        $region14: #{tpu_custom_call.1} parent=11 // pred_check_branch
          %117 = sbr.rel (%p115) target = $region16
        $region15: #{tpu_custom_call.1} parent=11 // pred_region
          _
        $region16: #{tpu_custom_call.1} parent=11 // pred_fallthru
          _
      $region12: #{tpu_custom_call.1} parent=5 // pred_fallthru
        _
      %p118 = scmp.lt.s32.totalorder %s11, 2
      // Predicated region
      $region17: #{tpu_custom_call.1} parent=5 // pred_check
        %p119 = pneg %p118
      $region18: #{tpu_custom_call.1} parent=5 // pred_check_branch
        %121 = sbr.rel (%p119) target = $region20
      $region19: #{tpu_custom_call.1} parent=5 // pred_region
        // Predicated region
        $region21: #{tpu_custom_call.1} parent=19 // pred_check
          %p122 = pneg %p45
        $region22: #{tpu_custom_call.1} parent=19 // pred_check_branch
          %124 = sbr.rel (%p122) target = $region24
        $region23: #{tpu_custom_call.1} parent=19 // pred_region
          %p125 = scmp.lt.s32.totalorder %s18, 1
          %s126 = scalar_select %p125, %s18, 1
          %p127 = scmp.lt.s32.totalorder %s19, 0
          %s128 = scalar_select %p127, %s19, 0
          %s129 = sadd.s32 %s128, %s126
          %s130 = smul.addr %s129, 4
          %s131 = scalar_lea.vmem %s0, %s130
        $region24: #{tpu_custom_call.1} parent=19 // pred_fallthru
          _
      $region20: #{tpu_custom_call.1} parent=5 // pred_fallthru
        _
      %p132 = scmp.le.s32.totalorder 1, %s11
      %p133 = scmp.lt.s32.totalorder %s11, 3
      %p134 = pnand %p132, %p133
      %p135 = pneg %p134
      // Predicated region
      $region25: #{tpu_custom_call.1} parent=5 // pred_check
        _
      $region26: #{tpu_custom_call.1} parent=5 // pred_check_branch
        %137 = sbr.rel (%p134) target = $region28
      $region27: #{tpu_custom_call.1} parent=5 // pred_region
        %s138 = ssub.s32 %s11, 1
        %p139 = scmp.lt.s32.totalorder %s20, 1
        %s140 = scalar_select %p139, %s20, 1
        %p141 = scmp.lt.s32.totalorder %s21, 0
        %s142 = scalar_select %p141, %s21, 0
        %s143 = sadd.s32 %s142, %s140
        %s144 = smul.addr %s143, 4
        %s145 = scalar_lea.vmem %s0, %s144
        %p146 = pneg %p51
        %p147 = pneg %p48
        %p148 = pneg %p72
        %p149 = pneg %p69
        %p150 = pneg %p100
        %p151 = pneg %p97
        %s152 = sand.u32 %s87, 1
        %s153 = scalar_lea.sflag [#allocation3], %s152
        %s154 = sand.u32 %s87, 1
        %s155 = smul.addr %s154, 4
        %s156 = scalar_lea.vmem [#allocation2], %s155
        %p157 = scmp.lt.s32.totalorder %s20, 1
        %s158 = scalar_select %p157, %s20, 1
        %p159 = scmp.lt.s32.totalorder %s21, 0
        %s160 = scalar_select %p159, %s21, 0
        %s161 = sadd.s32 %s160, %s158
        %s162 = smul.addr %s161, 4
        %s163 = scalar_lea.vmem %s0, %s162
        %v164 = vld [vmem:[%s163] sm:$0x7]
        %vm165 = vcmp.gt.s32.totalorder %v164, 4294967290
        %v166 = vsel %vm165, %v164, 4294967290
        %vm167 = vcmp.lt.s32.totalorder %v166, 6
        %v168 = vsel %vm167, %v166, 6
        %v169 = vadd.s32 %v168, 6
        %v170 = vlaneseq
        %v171 = vshrl.u32 %v170, 7
        %v172 = vadd.s32 %v171, 8
        %v173 = vlaneseq
        %v174 = vshrl.u32 %v173, 7
        %v175 = vsub.s32 0, %v174
        %v176 = vrot.slane %v169, %v175
        %vm177 = vcmp.eq.s32.totalorder %v171, %v176
        %vm178 = vcmp.eq.s32.totalorder %v172, %v176
        %v179 = vsel %vm177, 1, 0
        %v180 = vsel %vm178, 1, 0
        %v181 = vcvt.s32.f32 %v179
        %v182 = vcvt.s32.f32 %v180
        %v183 = vld [vmem:[%s1] sm:$0xf]
        %v184 = vlaneseq
        %v185 = vshrl.u32 %v184, 7
        %v186 = vsub.s32 1, %v185
        %v187 = vrot.slane %v169, %v186
        %vm188 = vcmp.eq.s32.totalorder %v171, %v187
        %vm189 = vcmp.eq.s32.totalorder %v172, %v187
        %v190 = vsel %vm188, 1, 0
        %v191 = vsel %vm189, 1, 0
        %v192 = vcvt.s32.f32 %v190
        %v193 = vcvt.s32.f32 %v191
        %s194 = scalar_lea.vmem %s1, 4
        %v195 = vld [vmem:[%s194] sm:$0xf]
        %vm196 = vcmask 105472
        %v198 = vsel %vm196, %v195, 0
        %vm200 = vcmask 1044480
        %v202 = vsel %vm200, %v193, 0
        %204 = vmatprep.subr.mxu0 0.0
        %205 = vmatpush1.msra.mxu0 0.0
        %206 = vmatprep.subr.mxu0 0.0
        %207 = vmatpush1.msra.mxu0 0.0
        %208 = vmatprep.subr.mxu0 0.0
        %209 = vmatpush1.msra.mxu0 0.0
        %210 = vmatprep.subr.mxu0 0.0
        %211 = vmatpush1.msra.mxu0 0.0
        %212 = vmatprep.subr.mxu0 0.0
        %213 = vmatpush1.msra.mxu0 0.0
        %214 = vmatprep.subr.mxu0 0.0
        %215 = vmatpush1.msra.mxu0 0.0
        %216 = vmatprep.subr.mxu0 0.0
        %217 = vmatpush1.msra.mxu0 0.0
        %218 = vmatprep.subr.mxu0 0.0
        %219 = vmatpush1.msra.mxu0 0.0
        %220 = vmatprep.subr.mxu0 0.0
        %221 = vmatpush1.msra.mxu0 0.0
        %222 = vmatprep.subr.mxu0 0.0
        %223 = vmatpush1.msra.mxu0 0.0
        %224 = vmatprep.subr.mxu0 0.0
        %225 = vmatpush1.msra.mxu0 0.0
        %226 = vmatprep.subr.mxu0 0.0
        %227 = vmatpush1.msra.mxu0 0.0
        %228 = vmatprep.subr.mxu0 0.0
        %229 = vmatpush1.msra.mxu0 0.0
        %230 = vmatprep.subr.mxu0 0.0
        %231 = vmatpush1.msra.mxu0 0.0
        %232 = vmatprep.subr.mxu0 0.0
        %233 = vmatpush1.msra.mxu0 %v202
        %234 = vmatprep.subr.mxu0 0.0
        %235 = vmatpush1.msra.mxu0 %v192
        %236 = vmatprep.subr.mxu0 0.0
        %237 = vmatpush2.msra.mxu0 0.0
        %238 = vmatprep.subr.mxu0 0.0
        %239 = vmatpush2.msra.mxu0 0.0
        %240 = vmatprep.subr.mxu0 0.0
        %241 = vmatpush2.msra.mxu0 0.0
        %242 = vmatprep.subr.mxu0 0.0
        %243 = vmatpush2.msra.mxu0 0.0
        %244 = vmatprep.subr.mxu0 0.0
        %245 = vmatpush2.msra.mxu0 0.0
        %246 = vmatprep.subr.mxu0 0.0
        %247 = vmatpush2.msra.mxu0 0.0
        %248 = vmatprep.subr.mxu0 0.0
        %249 = vmatpush2.msra.mxu0 0.0
        %250 = vmatprep.subr.mxu0 0.0
        %251 = vmatpush2.msra.mxu0 0.0
        %252 = vmatprep.subr.mxu0 0.0
        %253 = vmatpush2.msra.mxu0 0.0
        %254 = vmatprep.subr.mxu0 0.0
        %255 = vmatpush2.msra.mxu0 0.0
        %256 = vmatprep.subr.mxu0 0.0
        %257 = vmatpush2.msra.mxu0 0.0
        %258 = vmatprep.subr.mxu0 0.0
        %259 = vmatpush2.msra.mxu0 0.0
        %260 = vmatprep.subr.mxu0 0.0
        %261 = vmatpush2.msra.mxu0 0.0
        %262 = vmatprep.subr.mxu0 0.0
        %263 = vmatpush2.msra.mxu0 0.0
        %264 = vmatprep.subr.mxu0 0.0
        %265 = vmatpush2.msra.mxu0 0.0
        %266 = vmatprep.subr.mxu0 0.0
        %267 = vmatpush2.msra.mxu0 0.0
        %268 = vmatprep.mubr.f32.mxu0 0.0
        %269 = vmatmul.mubr.f32.gmra.mxu0 %v198
        %v270 = vpop.f32.mrf.mxu0
        %v271 = vadd.f32 0.0, %v270
        %v272 = vpop.f32.mrf.mxu0
        %273 = vdwg.mxu0
        %v275 = vsel %vm196, %v183, 0
        %v278 = vsel %vm200, %v182, 0
        %280 = vmatprep.subr.mxu0 0.0
        %281 = vmatpush1.msra.mxu0 0.0
        %282 = vmatprep.subr.mxu0 0.0
        %283 = vmatpush1.msra.mxu0 0.0
        %284 = vmatprep.subr.mxu0 0.0
        %285 = vmatpush1.msra.mxu0 0.0
        %286 = vmatprep.subr.mxu0 0.0
        %287 = vmatpush1.msra.mxu0 0.0
        %288 = vmatprep.subr.mxu0 0.0
        %289 = vmatpush1.msra.mxu0 0.0
        %290 = vmatprep.subr.mxu0 0.0
        %291 = vmatpush1.msra.mxu0 0.0
        %292 = vmatprep.subr.mxu0 0.0
        %293 = vmatpush1.msra.mxu0 0.0
        %294 = vmatprep.subr.mxu0 0.0
        %295 = vmatpush1.msra.mxu0 0.0
        %296 = vmatprep.subr.mxu0 0.0
        %297 = vmatpush1.msra.mxu0 0.0
        %298 = vmatprep.subr.mxu0 0.0
        %299 = vmatpush1.msra.mxu0 0.0
        %300 = vmatprep.subr.mxu0 0.0
        %301 = vmatpush1.msra.mxu0 0.0
        %302 = vmatprep.subr.mxu0 0.0
        %303 = vmatpush1.msra.mxu0 0.0
        %304 = vmatprep.subr.mxu0 0.0
        %305 = vmatpush1.msra.mxu0 0.0
        %306 = vmatprep.subr.mxu0 0.0
        %307 = vmatpush1.msra.mxu0 0.0
        %308 = vmatprep.subr.mxu0 0.0
        %309 = vmatpush1.msra.mxu0 %v278
        %310 = vmatprep.subr.mxu0 0.0
        %311 = vmatpush1.msra.mxu0 %v181
        %312 = vmatprep.subr.mxu0 0.0
        %313 = vmatpush2.msra.mxu0 0.0
        %314 = vmatprep.subr.mxu0 0.0
        %315 = vmatpush2.msra.mxu0 0.0
        %316 = vmatprep.subr.mxu0 0.0
        %317 = vmatpush2.msra.mxu0 0.0
        %318 = vmatprep.subr.mxu0 0.0
        %319 = vmatpush2.msra.mxu0 0.0
        %320 = vmatprep.subr.mxu0 0.0
        %321 = vmatpush2.msra.mxu0 0.0
        %322 = vmatprep.subr.mxu0 0.0
        %323 = vmatpush2.msra.mxu0 0.0
        %324 = vmatprep.subr.mxu0 0.0
        %325 = vmatpush2.msra.mxu0 0.0
        %326 = vmatprep.subr.mxu0 0.0
        %327 = vmatpush2.msra.mxu0 0.0
        %328 = vmatprep.subr.mxu0 0.0
        %329 = vmatpush2.msra.mxu0 0.0
        %330 = vmatprep.subr.mxu0 0.0
        %331 = vmatpush2.msra.mxu0 0.0
        %332 = vmatprep.subr.mxu0 0.0
        %333 = vmatpush2.msra.mxu0 0.0
        %334 = vmatprep.subr.mxu0 0.0
        %335 = vmatpush2.msra.mxu0 0.0
        %336 = vmatprep.subr.mxu0 0.0
        %337 = vmatpush2.msra.mxu0 0.0
        %338 = vmatprep.subr.mxu0 0.0
        %339 = vmatpush2.msra.mxu0 0.0
        %340 = vmatprep.subr.mxu0 0.0
        %341 = vmatpush2.msra.mxu0 0.0
        %342 = vmatprep.subr.mxu0 0.0
        %343 = vmatpush2.msra.mxu0 0.0
        %344 = vmatprep.mubr.f32.mxu0 0.0
        %345 = vmatmul.mubr.f32.gmra.mxu0 %v275
        %v346 = vpop.f32.mrf.mxu0
        %v347 = vadd.f32 %v271, %v346
        %v348 = vpop.f32.mrf.mxu0
        %349 = vdwg.mxu0
        %v350 = vlaneseq
        %v351 = vshrl.u32 %v350, 7
        %v352 = vsub.s32 2, %v351
        %v353 = vrot.slane %v169, %v352
        %vm354 = vcmp.eq.s32.totalorder %v171, %v353
        %vm355 = vcmp.eq.s32.totalorder %v172, %v353
        %v356 = vsel %vm354, 1, 0
        %v357 = vsel %vm355, 1, 0
        %v358 = vcvt.s32.f32 %v356
        %v359 = vcvt.s32.f32 %v357
        %s360 = scalar_lea.vmem %s1, 8
        %v361 = vld [vmem:[%s360] sm:$0xf]
        %v363 = vsel %vm196, %v361, 0
        %v366 = vsel %vm200, %v359, 0
        %368 = vmatprep.subr.mxu0 0.0
        %369 = vmatpush1.msra.mxu0 0.0
        %370 = vmatprep.subr.mxu0 0.0
        %371 = vmatpush1.msra.mxu0 0.0
        %372 = vmatprep.subr.mxu0 0.0
        %373 = vmatpush1.msra.mxu0 0.0
        %374 = vmatprep.subr.mxu0 0.0
        %375 = vmatpush1.msra.mxu0 0.0
        %376 = vmatprep.subr.mxu0 0.0
        %377 = vmatpush1.msra.mxu0 0.0
        %378 = vmatprep.subr.mxu0 0.0
        %379 = vmatpush1.msra.mxu0 0.0
        %380 = vmatprep.subr.mxu0 0.0
        %381 = vmatpush1.msra.mxu0 0.0
        %382 = vmatprep.subr.mxu0 0.0
        %383 = vmatpush1.msra.mxu0 0.0
        %384 = vmatprep.subr.mxu0 0.0
        %385 = vmatpush1.msra.mxu0 0.0
        %386 = vmatprep.subr.mxu0 0.0
        %387 = vmatpush1.msra.mxu0 0.0
        %388 = vmatprep.subr.mxu0 0.0
        %389 = vmatpush1.msra.mxu0 0.0
        %390 = vmatprep.subr.mxu0 0.0
        %391 = vmatpush1.msra.mxu0 0.0
        %392 = vmatprep.subr.mxu0 0.0
        %393 = vmatpush1.msra.mxu0 0.0
        %394 = vmatprep.subr.mxu0 0.0
        %395 = vmatpush1.msra.mxu0 0.0
        %396 = vmatprep.subr.mxu0 0.0
        %397 = vmatpush1.msra.mxu0 %v366
        %398 = vmatprep.subr.mxu0 0.0
        %399 = vmatpush1.msra.mxu0 %v358
        %400 = vmatprep.subr.mxu0 0.0
        %401 = vmatpush2.msra.mxu0 0.0
        %402 = vmatprep.subr.mxu0 0.0
        %403 = vmatpush2.msra.mxu0 0.0
        %404 = vmatprep.subr.mxu0 0.0
        %405 = vmatpush2.msra.mxu0 0.0
        %406 = vmatprep.subr.mxu0 0.0
        %407 = vmatpush2.msra.mxu0 0.0
        %408 = vmatprep.subr.mxu0 0.0
        %409 = vmatpush2.msra.mxu0 0.0
        %410 = vmatprep.subr.mxu0 0.0
        %411 = vmatpush2.msra.mxu0 0.0
        %412 = vmatprep.subr.mxu0 0.0
        %413 = vmatpush2.msra.mxu0 0.0
        %414 = vmatprep.subr.mxu0 0.0
        %415 = vmatpush2.msra.mxu0 0.0
        %416 = vmatprep.subr.mxu0 0.0
        %417 = vmatpush2.msra.mxu0 0.0
        %418 = vmatprep.subr.mxu0 0.0
        %419 = vmatpush2.msra.mxu0 0.0
        %420 = vmatprep.subr.mxu0 0.0
        %421 = vmatpush2.msra.mxu0 0.0
        %422 = vmatprep.subr.mxu0 0.0
        %423 = vmatpush2.msra.mxu0 0.0
        %424 = vmatprep.subr.mxu0 0.0
        %425 = vmatpush2.msra.mxu0 0.0
        %426 = vmatprep.subr.mxu0 0.0
        %427 = vmatpush2.msra.mxu0 0.0
        %428 = vmatprep.subr.mxu0 0.0
        %429 = vmatpush2.msra.mxu0 0.0
        %430 = vmatprep.subr.mxu0 0.0
        %431 = vmatpush2.msra.mxu0 0.0
        %432 = vmatprep.mubr.f32.mxu0 0.0
        %433 = vmatmul.mubr.f32.gmra.mxu0 %v363
        %v434 = vpop.f32.mrf.mxu0
        %v435 = vadd.f32 0.0, %v434
        %v436 = vpop.f32.mrf.mxu0
        %437 = vdwg.mxu0
        %v438 = vadd.f32 %v347, %v435
        %vm439 = vcmask 519168
        %440 = vst.msk [vmem:[%s156] sm:$0xf] %vm439, %v438
        %s441 = sand.u32 %s87, 1
        %s442 = scalar_lea.sflag [#allocation3], %s441
        %s443 = sand.u32 %s87, 1
        %s444 = smul.addr %s443, 4
        %s445 = scalar_lea.vmem [#allocation2], %s444
        // Predicated region
        $region29: #{tpu_custom_call.1} parent=27 // pred_check
          %p446 = pneg %p97
        $region30: #{tpu_custom_call.1} parent=27 // pred_check_branch
          %448 = sbr.rel (%p446) target = $region32
        $region31: #{tpu_custom_call.1} parent=27 // pred_region
          %s450 = ssub.s32 64, 64
          %451 = vsyncadd %s442, %s450
          %s452 = sadd.s32 %s21, %s20
          %s453 = smul.addr %s452, 64
          %s454 = scalar_lea.hbm %s2, %s453
          %s456 = sshll.u32 %s445, 4
          %s457 = int_to_ptr.vmem [resolvable:$true] %s456
          %459 = dma.vmem_to_hbm [thread:$0]  %s457, 64, %s454, %s442
        $region32: #{tpu_custom_call.1} parent=27 // pred_fallthru
          _
      $region28: #{tpu_custom_call.1} parent=5 // pred_fallthru
        _
      %p460 = scmp.le.s32.totalorder 2, %s11
      // Predicated region
      $region33: #{tpu_custom_call.1} parent=5 // pred_check
        %p461 = pneg %p460
      $region34: #{tpu_custom_call.1} parent=5 // pred_check_branch
        %463 = sbr.rel (%p461) target = $region36
      $region35: #{tpu_custom_call.1} parent=5 // pred_region
        %s464 = ssub.s32 %s11, 2
        // Predicated region
        $region37: #{tpu_custom_call.1} parent=35 // pred_check
          %p465 = pneg %p103
        $region38: #{tpu_custom_call.1} parent=35 // pred_check_branch
          %467 = sbr.rel (%p465) target = $region40
        $region39: #{tpu_custom_call.1} parent=35 // pred_region
          %s468 = sand.u32 %s88, 1
          %s469 = scalar_lea.sflag [#allocation3], %s468
          %s470 = sand.u32 %s88, 1
          %s471 = smul.addr %s470, 4
          %s472 = scalar_lea.vmem [#allocation2], %s471
          %473 = dma.done %s469, 64
        $region40: #{tpu_custom_call.1} parent=35 // pred_fallthru
          _
      $region36: #{tpu_custom_call.1} parent=5 // pred_fallthru
        _
    $region6: #{tpu_custom_call.1} parent=1 // loop_footer
      %s15 = sadd.s32 1, %s11
    $region7: #{tpu_custom_call.1} parent=1 // loop_footer_branch
      %10 = sbr.rel target = $region3
    $region8: #{tpu_custom_call.1} parent=1 // loop_exit
      _
    %474 = vsyncpa [#allocation3], 1
    %s475 = scalar_lea.sflag [#allocation3], 1
    %476 = vsyncpa %s475, 1

</llo_original>
